<compile_context>
chip_gen: v5e
topology: v5e:2x2
jax: 0.10.0
libtpu: 0.0.40
codegen_flags: <defaults>
</compile_context>

<pallas_src>
import jax
import jax.numpy as jnp
from jax.experimental import pallas as pl
from jax.experimental.pallas import tpu as pltpu

LANE = 128


def _conv1x1_vpu_kernel(w_ref, b_ref, x_ref, o_ref):
    """Small-C path: per-output-channel scalar-weight FMAs on dense pixel slabs.

    w_ref: (OUT, C) f32 in SMEM (scalar reads)
    b_ref: (OUT,)   f32 in SMEM (scalar reads)
    x_ref: (C, *pix) VMEM block (2-D or 3-D pixel slab)
    o_ref: (OUT, *pix) VMEM block with the same pixel slab shape
    """
    out_dim, c_dim = w_ref.shape
    for o in range(out_dim):
        acc = w_ref[o, 0] * x_ref[0].astype(jnp.float32)
        for c in range(1, c_dim):
            acc = acc + w_ref[o, c] * x_ref[c].astype(jnp.float32)
        o_ref[o] = (acc + b_ref[o]).astype(o_ref.dtype)


def _conv1x1_mxu_kernel(w_ref, b_ref, x_ref, o_ref):
    """Large-C path: (OUT, C) @ (C, TL) on the MXU, bias broadcast-add.

    w_ref: (OUT, C) VMEM, b_ref: (OUT, 1) f32 VMEM,
    x_ref: (C, TL) VMEM, o_ref: (OUT, TL) VMEM.
    """
    acc = jnp.dot(w_ref[...], x_ref[...], preferred_element_type=jnp.float32)
    o_ref[...] = (acc + b_ref[...].astype(jnp.float32)).astype(o_ref.dtype)


def _vmem_budget():
    """Returns (block_budget_bytes, vmem_limit_bytes), generation-aware."""
    try:
        cap = pltpu.get_tpu_info().vmem_capacity_bytes
    except Exception:
        cap = 64 * 1024 * 1024
    if cap >= 96 * 1024 * 1024:                   # v5e / v6e: 128 MiB physical
        return 32 * 1024 * 1024, 80 * 1024 * 1024
    return 20 * 1024 * 1024, 44 * 1024 * 1024     # v7x: 64 MiB physical


def _choose_row_tile(c, out, rows, n, itemsize, budget_bytes):
    """Sublane-row tile (multiple of 8, or full `rows`) for the slab layout."""
    per_row = 2 * (c + out) * LANE * itemsize     # double-buffered in+out / row
    ts = budget_bytes // max(per_row, 1)
    ts = min(max(ts, 8), 4096)
    ts = (ts // 8) * 8
    if ts >= rows:
        ts = rows                                 # full-dim block: always legal
    num_tiles = int(pl.cdiv(rows, ts))
    # Keep >=2 parallel grid steps when possible so both v7x TCs get work.
    if n * num_tiles == 1 and rows >= 16:
        ts = ((rows // 2 + 7) // 8) * 8
        num_tiles = int(pl.cdiv(rows, ts))
    return int(ts), num_tiles


def _choose_lane_tile(c, out, hw, n, itemsize, budget_bytes):
    """Lane tile (multiple of 128, or full `hw`) for the flat layout."""
    per_lane = 2 * (c + out) * itemsize
    tl = budget_bytes // max(per_lane, 1)
    tl = min(max(tl, LANE), 4096 * LANE)
    tl = (tl // LANE) * LANE
    if tl >= hw:
        tl = hw
    num_tiles = int(pl.cdiv(hw, tl))
    if n * num_tiles == 1 and hw >= 2 * LANE:
        tl = ((hw // 2 + LANE - 1) // LANE) * LANE
        num_tiles = int(pl.cdiv(hw, tl))
    return int(tl), num_tiles


def msi_embedder1_forward(x_nchw, weight, bias, *, mxu_min_channels=32):
    """1x1 conv forward. x_nchw: (N, C, H, W); weight: (OUT, C); bias: (OUT,)."""
    N, C, H, W = x_nchw.shape
    OUT = weight.shape[0]
    HW = H * W
    in_itemsize = jnp.dtype(x_nchw.dtype).itemsize
    out_dtype = jnp.promote_types(x_nchw.dtype, weight.dtype)  # match PyTorch
    out_itemsize = jnp.dtype(out_dtype).itemsize
    itemsize = max(in_itemsize, out_itemsize)

    budget, vmem_limit = _vmem_budget()
    cost = pl.CostEstimate(
        flops=int(2 * N * HW * C * OUT),
        transcendentals=0,
        bytes_accessed=int(N * HW * (C * in_itemsize + OUT * out_itemsize)
                           + weight.size * jnp.dtype(weight.dtype).itemsize
                           + bias.size * jnp.dtype(bias.dtype).itemsize),
    )
    cparams = pltpu.CompilerParams(
        dimension_semantics=("parallel", "parallel"),
        vmem_limit_bytes=vmem_limit,
    )

    use_mxu = C >= mxu_min_channels
    use_slab = (not use_mxu) and (HW % LANE == 0)

    if use_slab:
        # Sublane-dense layout: free HBM view (N, C, HW) -> (N, C, rows, 128).
        rows = HW // LANE
        ts, num_tiles = _choose_row_tile(C, OUT, rows, N, itemsize, budget)
        x_v = x_nchw.reshape(N, C, rows, LANE)
        out = pl.pallas_call(
            _conv1x1_vpu_kernel,
            out_shape=jax.ShapeDtypeStruct((N, OUT, rows, LANE), out_dtype),
            grid_spec=pltpu.PrefetchScalarGridSpec(
                num_scalar_prefetch=0,
                grid=(N, num_tiles),
                in_specs=[
                    pl.BlockSpec(memory_space=pltpu.MemorySpace.SMEM),  # weight
                    pl.BlockSpec(memory_space=pltpu.MemorySpace.SMEM),  # bias
                    pl.BlockSpec((None, C, ts, LANE), lambda n, t: (n, 0, t, 0)),
                ],
                out_specs=pl.BlockSpec((None, OUT, ts, LANE),
                                       lambda n, t: (n, 0, t, 0)),
            ),
            compiler_params=cparams,
            cost_estimate=cost,
        )(weight.astype(jnp.float32), bias.astype(jnp.float32), x_v)
        return out.reshape(N, OUT, H, W)

    # Flat pixel layout (N, C, HW); ragged last tile handled by Pallas
    # (OOB reads padded, OOB writes dropped) -> no host-side pad / slice.
    tl, num_tiles = _choose_lane_tile(C, OUT, HW, N, itemsize, budget)
    x_v = x_nchw.reshape(N, C, HW)
    if use_mxu:
        kernel = _conv1x1_mxu_kernel
        w_in = weight.astype(x_nchw.dtype)        # MXU-friendly operand dtype
        b_in = bias.reshape(OUT, 1).astype(jnp.float32)
        w_spec = pl.BlockSpec((OUT, C), lambda n, t: (0, 0))
        b_spec = pl.BlockSpec((OUT, 1), lambda n, t: (0, 0))
        # TODO(synk): for very large C, add a C-tiling reduction grid axis
        # (P3 accumulator) instead of letting the lane tile shrink.
    else:
        kernel = _conv1x1_vpu_kernel
        w_in = weight.astype(jnp.float32)
        b_in = bias.astype(jnp.float32)
        w_spec = pl.BlockSpec(memory_space=pltpu.MemorySpace.SMEM)
        b_spec = pl.BlockSpec(memory_space=pltpu.MemorySpace.SMEM)

    out = pl.pallas_call(
        kernel,
        out_shape=jax.ShapeDtypeStruct((N, OUT, HW), out_dtype),
        grid_spec=pltpu.PrefetchScalarGridSpec(
            num_scalar_prefetch=0,
            grid=(N, num_tiles),
            in_specs=[
                w_spec,
                b_spec,
                pl.BlockSpec((None, C, tl), lambda n, t: (n, 0, t)),
            ],
            out_specs=pl.BlockSpec((None, OUT, tl), lambda n, t: (n, 0, t)),
        ),
        compiler_params=cparams,
        cost_estimate=cost,
    )(w_in, b_in, x_v)
    return out.reshape(N, OUT, H, W)


def init_params(key, in_channels, out_channels=3):
    # Deterministic init mirroring nn.Conv2d default (uniform +-1/sqrt(fan_in)),
    # kernel_size=1 so fan_in = in_channels.
    kw, kb = jax.random.split(key)
    bound = 1.0 / jnp.sqrt(jnp.float32(in_channels))
    weight = jax.random.uniform(kw, (out_channels, in_channels),
                                minval=-bound, maxval=bound, dtype=jnp.float32)
    bias = jax.random.uniform(kb, (out_channels,),
                              minval=-bound, maxval=bound, dtype=jnp.float32)
    return weight, bias


if __name__ == "__main__":
    key = jax.random.PRNGKey(0)
    kx, kp = jax.random.split(key)

    N, C, H, W = 2, 4, 16, 16
    x = jax.random.normal(kx, (N, C, H, W), dtype=jnp.float32)
    weight, bias = init_params(kp, in_channels=C, out_channels=3)

    fwd = jax.jit(msi_embedder1_forward)
    out = jax.block_until_ready(fwd(x, weight, bias))

    # Reference check against plain-JAX 1x1 conv (einsum).
    ref = jnp.einsum("nchw,oc->nohw", x, weight) + bias[None, :, None, None]
    assert out.shape == (N, 3, H, W)
    assert out.dtype == ref.dtype
    assert jnp.allclose(out, ref, atol=1e-5, rtol=1e-5)

    print("KERNEL_OK")
</pallas_src>

<mosaic_0001>
module attributes {stable_mosaic.version = 11 : i64} {
  func.func @_conv1x1_vpu_kernel(%arg0: i32, %arg1: i32, %arg2: memref<3x4xf32, #tpu.memory_space<smem>>, %arg3: memref<3xf32, #tpu.memory_space<smem>>, %arg4: memref<1x4x2x128xf32, #tpu.memory_space<vmem>>, %arg5: memref<1x3x2x128xf32, #tpu.memory_space<vmem>>) attributes {dimension_semantics = [#tpu.dimension_semantics<parallel>, #tpu.dimension_semantics<parallel>], iteration_bounds = array<i64: 2, 1>, scalar_prefetch = 0 : i64, scratch_operands = 0 : i64, tpu.core_type = #tpu.core_type<tc>, window_params = [{transform_indices = @transform_0, window_bounds = array<i64: 3, 4>}, {transform_indices = @transform_1, window_bounds = array<i64: 3>}, {transform_indices = @transform_2, window_bounds = array<i64: 1, 4, 2, 128>}, {transform_indices = @transform_3, window_bounds = array<i64: 1, 3, 2, 128>}]} {
    %c0 = arith.constant 0 : index
    %c0_0 = arith.constant 0 : index
    %0 = memref.load %arg2[%c0, %c0_0] : memref<3x4xf32, #tpu.memory_space<smem>>
    %c0_1 = arith.constant 0 : index
    %c0_2 = arith.constant 0 : index
    %c0_3 = arith.constant 0 : index
    %c0_4 = arith.constant 0 : index
    %1 = vector.load %arg4[%c0_1, %c0_2, %c0_3, %c0_4] : memref<1x4x2x128xf32, #tpu.memory_space<vmem>>, vector<1x1x2x128xf32>
    %2 = vector.shape_cast %1 : vector<1x1x2x128xf32> to vector<2x128xf32>
    %3 = vector.broadcast %0 : f32 to vector<2x128xf32>
    %4 = arith.mulf %3, %2 : vector<2x128xf32>
    %c0_5 = arith.constant 0 : index
    %c1 = arith.constant 1 : index
    %5 = memref.load %arg2[%c0_5, %c1] : memref<3x4xf32, #tpu.memory_space<smem>>
    %c0_6 = arith.constant 0 : index
    %c1_7 = arith.constant 1 : index
    %c0_8 = arith.constant 0 : index
    %c0_9 = arith.constant 0 : index
    %6 = vector.load %arg4[%c0_6, %c1_7, %c0_8, %c0_9] : memref<1x4x2x128xf32, #tpu.memory_space<vmem>>, vector<1x1x2x128xf32>
    %7 = vector.shape_cast %6 : vector<1x1x2x128xf32> to vector<2x128xf32>
    %8 = vector.broadcast %5 : f32 to vector<2x128xf32>
    %9 = arith.mulf %8, %7 : vector<2x128xf32>
    %10 = arith.addf %4, %9 : vector<2x128xf32>
    %c0_10 = arith.constant 0 : index
    %c2 = arith.constant 2 : index
    %11 = memref.load %arg2[%c0_10, %c2] : memref<3x4xf32, #tpu.memory_space<smem>>
    %c0_11 = arith.constant 0 : index
    %c2_12 = arith.constant 2 : index
    %c0_13 = arith.constant 0 : index
    %c0_14 = arith.constant 0 : index
    %12 = vector.load %arg4[%c0_11, %c2_12, %c0_13, %c0_14] : memref<1x4x2x128xf32, #tpu.memory_space<vmem>>, vector<1x1x2x128xf32>
    %13 = vector.shape_cast %12 : vector<1x1x2x128xf32> to vector<2x128xf32>
    %14 = vector.broadcast %11 : f32 to vector<2x128xf32>
    %15 = arith.mulf %14, %13 : vector<2x128xf32>
    %16 = arith.addf %10, %15 : vector<2x128xf32>
    %c0_15 = arith.constant 0 : index
    %c3 = arith.constant 3 : index
    %17 = memref.load %arg2[%c0_15, %c3] : memref<3x4xf32, #tpu.memory_space<smem>>
    %c0_16 = arith.constant 0 : index
    %c3_17 = arith.constant 3 : index
    %c0_18 = arith.constant 0 : index
    %c0_19 = arith.constant 0 : index
    %18 = vector.load %arg4[%c0_16, %c3_17, %c0_18, %c0_19] : memref<1x4x2x128xf32, #tpu.memory_space<vmem>>, vector<1x1x2x128xf32>
    %19 = vector.shape_cast %18 : vector<1x1x2x128xf32> to vector<2x128xf32>
    %20 = vector.broadcast %17 : f32 to vector<2x128xf32>
    %21 = arith.mulf %20, %19 : vector<2x128xf32>
    %22 = arith.addf %16, %21 : vector<2x128xf32>
    %c0_20 = arith.constant 0 : index
    %23 = memref.load %arg3[%c0_20] : memref<3xf32, #tpu.memory_space<smem>>
    %24 = vector.broadcast %23 : f32 to vector<2x128xf32>
    %25 = arith.addf %22, %24 : vector<2x128xf32>
    %c0_21 = arith.constant 0 : index
    %c0_22 = arith.constant 0 : index
    %c0_23 = arith.constant 0 : index
    %c0_24 = arith.constant 0 : index
    %26 = vector.load %arg5[%c0_21, %c0_22, %c0_23, %c0_24] : memref<1x3x2x128xf32, #tpu.memory_space<vmem>>, vector<1x1x2x128xf32>
    %27 = vector.shape_cast %26 : vector<1x1x2x128xf32> to vector<2x128xf32>
    %28 = vector.shape_cast %25 : vector<2x128xf32> to vector<1x1x2x128xf32>
    tpu.vector_store %arg5[%c0_21, %c0_22, %c0_23, %c0_24], %28 {strides = array<i32>} : memref<1x3x2x128xf32, #tpu.memory_space<vmem>>, vector<1x1x2x128xf32>,
    %c1_25 = arith.constant 1 : index
    %c0_26 = arith.constant 0 : index
    %29 = memref.load %arg2[%c1_25, %c0_26] : memref<3x4xf32, #tpu.memory_space<smem>>
    %c0_27 = arith.constant 0 : index
    %c0_28 = arith.constant 0 : index
    %c0_29 = arith.constant 0 : index
    %c0_30 = arith.constant 0 : index
    %30 = vector.load %arg4[%c0_27, %c0_28, %c0_29, %c0_30] : memref<1x4x2x128xf32, #tpu.memory_space<vmem>>, vector<1x1x2x128xf32>
    %31 = vector.shape_cast %30 : vector<1x1x2x128xf32> to vector<2x128xf32>
    %32 = vector.broadcast %29 : f32 to vector<2x128xf32>
    %33 = arith.mulf %32, %31 : vector<2x128xf32>
    %c1_31 = arith.constant 1 : index
    %c1_32 = arith.constant 1 : index
    %34 = memref.load %arg2[%c1_31, %c1_32] : memref<3x4xf32, #tpu.memory_space<smem>>
    %c0_33 = arith.constant 0 : index
    %c1_34 = arith.constant 1 : index
    %c0_35 = arith.constant 0 : index
    %c0_36 = arith.constant 0 : index
    %35 = vector.load %arg4[%c0_33, %c1_34, %c0_35, %c0_36] : memref<1x4x2x128xf32, #tpu.memory_space<vmem>>, vector<1x1x2x128xf32>
    %36 = vector.shape_cast %35 : vector<1x1x2x128xf32> to vector<2x128xf32>
    %37 = vector.broadcast %34 : f32 to vector<2x128xf32>
    %38 = arith.mulf %37, %36 : vector<2x128xf32>
    %39 = arith.addf %33, %38 : vector<2x128xf32>
    %c1_37 = arith.constant 1 : index
    %c2_38 = arith.constant 2 : index
    %40 = memref.load %arg2[%c1_37, %c2_38] : memref<3x4xf32, #tpu.memory_space<smem>>
    %c0_39 = arith.constant 0 : index
    %c2_40 = arith.constant 2 : index
    %c0_41 = arith.constant 0 : index
    %c0_42 = arith.constant 0 : index
    %41 = vector.load %arg4[%c0_39, %c2_40, %c0_41, %c0_42] : memref<1x4x2x128xf32, #tpu.memory_space<vmem>>, vector<1x1x2x128xf32>
    %42 = vector.shape_cast %41 : vector<1x1x2x128xf32> to vector<2x128xf32>
    %43 = vector.broadcast %40 : f32 to vector<2x128xf32>
    %44 = arith.mulf %43, %42 : vector<2x128xf32>
    %45 = arith.addf %39, %44 : vector<2x128xf32>
    %c1_43 = arith.constant 1 : index
    %c3_44 = arith.constant 3 : index
    %46 = memref.load %arg2[%c1_43, %c3_44] : memref<3x4xf32, #tpu.memory_space<smem>>
    %c0_45 = arith.constant 0 : index
    %c3_46 = arith.constant 3 : index
    %c0_47 = arith.constant 0 : index
    %c0_48 = arith.constant 0 : index
    %47 = vector.load %arg4[%c0_45, %c3_46, %c0_47, %c0_48] : memref<1x4x2x128xf32, #tpu.memory_space<vmem>>, vector<1x1x2x128xf32>
    %48 = vector.shape_cast %47 : vector<1x1x2x128xf32> to vector<2x128xf32>
    %49 = vector.broadcast %46 : f32 to vector<2x128xf32>
    %50 = arith.mulf %49, %48 : vector<2x128xf32>
    %51 = arith.addf %45, %50 : vector<2x128xf32>
    %c1_49 = arith.constant 1 : index
    %52 = memref.load %arg3[%c1_49] : memref<3xf32, #tpu.memory_space<smem>>
    %53 = vector.broadcast %52 : f32 to vector<2x128xf32>
    %54 = arith.addf %51, %53 : vector<2x128xf32>
    %c0_50 = arith.constant 0 : index
    %c1_51 = arith.constant 1 : index
    %c0_52 = arith.constant 0 : index
    %c0_53 = arith.constant 0 : index
    %55 = vector.load %arg5[%c0_50, %c1_51, %c0_52, %c0_53] : memref<1x3x2x128xf32, #tpu.memory_space<vmem>>, vector<1x1x2x128xf32>
    %56 = vector.shape_cast %55 : vector<1x1x2x128xf32> to vector<2x128xf32>
    %57 = vector.shape_cast %54 : vector<2x128xf32> to vector<1x1x2x128xf32>
    tpu.vector_store %arg5[%c0_50, %c1_51, %c0_52, %c0_53], %57 {strides = array<i32>} : memref<1x3x2x128xf32, #tpu.memory_space<vmem>>, vector<1x1x2x128xf32>,
    %c2_54 = arith.constant 2 : index
    %c0_55 = arith.constant 0 : index
    %58 = memref.load %arg2[%c2_54, %c0_55] : memref<3x4xf32, #tpu.memory_space<smem>>
    %c0_56 = arith.constant 0 : index
    %c0_57 = arith.constant 0 : index
    %c0_58 = arith.constant 0 : index
    %c0_59 = arith.constant 0 : index
    %59 = vector.load %arg4[%c0_56, %c0_57, %c0_58, %c0_59] : memref<1x4x2x128xf32, #tpu.memory_space<vmem>>, vector<1x1x2x128xf32>
    %60 = vector.shape_cast %59 : vector<1x1x2x128xf32> to vector<2x128xf32>
    %61 = vector.broadcast %58 : f32 to vector<2x128xf32>
    %62 = arith.mulf %61, %60 : vector<2x128xf32>
    %c2_60 = arith.constant 2 : index
    %c1_61 = arith.constant 1 : index
    %63 = memref.load %arg2[%c2_60, %c1_61] : memref<3x4xf32, #tpu.memory_space<smem>>
    %c0_62 = arith.constant 0 : index
    %c1_63 = arith.constant 1 : index
    %c0_64 = arith.constant 0 : index
    %c0_65 = arith.constant 0 : index
    %64 = vector.load %arg4[%c0_62, %c1_63, %c0_64, %c0_65] : memref<1x4x2x128xf32, #tpu.memory_space<vmem>>, vector<1x1x2x128xf32>
    %65 = vector.shape_cast %64 : vector<1x1x2x128xf32> to vector<2x128xf32>
    %66 = vector.broadcast %63 : f32 to vector<2x128xf32>
    %67 = arith.mulf %66, %65 : vector<2x128xf32>
    %68 = arith.addf %62, %67 : vector<2x128xf32>
    %c2_66 = arith.constant 2 : index
    %c2_67 = arith.constant 2 : index
    %69 = memref.load %arg2[%c2_66, %c2_67] : memref<3x4xf32, #tpu.memory_space<smem>>
    %c0_68 = arith.constant 0 : index
    %c2_69 = arith.constant 2 : index
    %c0_70 = arith.constant 0 : index
    %c0_71 = arith.constant 0 : index
    %70 = vector.load %arg4[%c0_68, %c2_69, %c0_70, %c0_71] : memref<1x4x2x128xf32, #tpu.memory_space<vmem>>, vector<1x1x2x128xf32>
    %71 = vector.shape_cast %70 : vector<1x1x2x128xf32> to vector<2x128xf32>
    %72 = vector.broadcast %69 : f32 to vector<2x128xf32>
    %73 = arith.mulf %72, %71 : vector<2x128xf32>
    %74 = arith.addf %68, %73 : vector<2x128xf32>
    %c2_72 = arith.constant 2 : index
    %c3_73 = arith.constant 3 : index
    %75 = memref.load %arg2[%c2_72, %c3_73] : memref<3x4xf32, #tpu.memory_space<smem>>
    %c0_74 = arith.constant 0 : index
    %c3_75 = arith.constant 3 : index
    %c0_76 = arith.constant 0 : index
    %c0_77 = arith.constant 0 : index
    %76 = vector.load %arg4[%c0_74, %c3_75, %c0_76, %c0_77] : memref<1x4x2x128xf32, #tpu.memory_space<vmem>>, vector<1x1x2x128xf32>
    %77 = vector.shape_cast %76 : vector<1x1x2x128xf32> to vector<2x128xf32>
    %78 = vector.broadcast %75 : f32 to vector<2x128xf32>
    %79 = arith.mulf %78, %77 : vector<2x128xf32>
    %80 = arith.addf %74, %79 : vector<2x128xf32>
    %c2_78 = arith.constant 2 : index
    %81 = memref.load %arg3[%c2_78] : memref<3xf32, #tpu.memory_space<smem>>
    %82 = vector.broadcast %81 : f32 to vector<2x128xf32>
    %83 = arith.addf %80, %82 : vector<2x128xf32>
    %c0_79 = arith.constant 0 : index
    %c2_80 = arith.constant 2 : index
    %c0_81 = arith.constant 0 : index
    %c0_82 = arith.constant 0 : index
    %84 = vector.load %arg5[%c0_79, %c2_80, %c0_81, %c0_82] : memref<1x3x2x128xf32, #tpu.memory_space<vmem>>, vector<1x1x2x128xf32>
    %85 = vector.shape_cast %84 : vector<1x1x2x128xf32> to vector<2x128xf32>
    %86 = vector.shape_cast %83 : vector<2x128xf32> to vector<1x1x2x128xf32>
    tpu.vector_store %arg5[%c0_79, %c2_80, %c0_81, %c0_82], %86 {strides = array<i32>} : memref<1x3x2x128xf32, #tpu.memory_space<vmem>>, vector<1x1x2x128xf32>,
    return
  }
  func.func @transform_0(%arg0: i32, %arg1: i32) -> (i32, i32) {
    %c0_i32 = arith.constant 0 : i32
    %c0_i32_0 = arith.constant 0 : i32
    %c0_i32_1 = arith.constant 0 : i32
    return %c0_i32, %c0_i32_0 : i32, i32
  }
  func.func @transform_1(%arg0: i32, %arg1: i32) -> i32 {
    %c0_i32 = arith.constant 0 : i32
    %c0_i32_0 = arith.constant 0 : i32
    return %c0_i32 : i32
  }
  func.func @transform_2(%arg0: i32, %arg1: i32) -> (i32, i32, i32, i32) {
    %c0_i32 = arith.constant 0 : i32
    %c0_i32_0 = arith.constant 0 : i32
    %c0_i32_1 = arith.constant 0 : i32
    return %arg0, %c0_i32, %arg1, %c0_i32_0 : i32, i32, i32, i32
  }
  func.func @transform_3(%arg0: i32, %arg1: i32) -> (i32, i32, i32, i32) {
    %c0_i32 = arith.constant 0 : i32
    %c0_i32_0 = arith.constant 0 : i32
    %c0_i32_1 = arith.constant 0 : i32
    return %arg0, %c0_i32, %arg1, %c0_i32_0 : i32, i32, i32, i32
  }
}

</mosaic_0001>

<llo_original>
// kernel: msi_embedder1_forward.1
$region0: #{msi_embedder1_forward.1}
  #allocation0 [shape = 'u32[]', space=smem, size = 0x4, offset = 0x4, fixed_abs, tag = 'smem constant byte address 0x4 - core index']
  #allocation1 [shape = 'u32[72,128]{1,0:T(1,128)}', space=vmem, size = 0x9000, scoped, tag = 'internal scratch']
  %s0 = inlined_call_operand.vmem [shape: f32[3,4], index: 0, kind: input, shape index: {}]
  %s1 = inlined_call_operand.vmem [shape: f32[3], index: 1, kind: input, shape index: {}]
  %s2 = inlined_call_operand.vmem [shape: f32[2,4,2,128], index: 2, kind: input, shape index: {}]
  %s3 = inlined_call_operand.vmem [shape: f32[2,3,2,128], index: 3, kind: output, shape index: {}]
  %s4 = sld [smem:[#allocation0]]
  $region53: #{msi_embedder1_forward.1} parent=0
    _
  %s6 = ssub.s32 1, %s4
  %s7 = scalar_select 0, %s6, %s4
  $region1: #{msi_embedder1_forward.1} parent=0
    #allocation2 [shape = 'u8[2048]{0}', space=smem, size = 0x800, scoped, tag = 'input window, operand 0, single buffered']
    #allocation3 [shape = 's32[2]{0}', space=sflag, size = 0x8, scoped, tag = 'scoped memory for msi_embedder1_forward.1']
    #allocation4 [shape = 'u8[512]{0}', space=smem, size = 0x200, scoped, tag = 'input window, operand 1, single buffered']
    #allocation5 [shape = 's32[1]{0}', space=sflag, size = 0x4, scoped, tag = 'scoped memory for msi_embedder1_forward.1']
    %8 = vsyncpa [#allocation3], 0
    %9 = vsyncpa [#allocation5], 0
    loop: start=0, step=1, limit=4
    $region2: #{msi_embedder1_forward.1} parent=1 // loop_pre_header
      _
    $region3: #{msi_embedder1_forward.1} parent=1 // loop_header
      %s11 = sphi 0, %s15
      %p12 = scmp.ge.s32.totalorder %s11, 4
      %s18 = sphi 0, %s30
      %s19 = sphi 0, %s26
      %s20 = sphi 0, %s18
      %s21 = sphi 0, %s19
      %s22 = sphi 0, %s20
      %s23 = sphi 0, %s21
      %s31 = sphi 0, %s31
      %s33 = sphi 0, %s31
      %s34 = sphi 0, %s33
      %s48 = sphi 0, %s34
      %s52 = sphi 0, %s52
      %s54 = sphi 0, %s52
      %s55 = sphi 0, %s54
      %s69 = sphi 0, %s55
      %s77 = sphi 0, %s79
      %s80 = sphi 0, %s77
      %s81 = sphi 0, %s80
      %s97 = sphi 0, %s81
      %s105 = sphi 0, %s107
      %s108 = sphi 0, %s105
      %s109 = sphi 0, %s108
      %s125 = sphi 0, %s109
    $region4: #{msi_embedder1_forward.1} parent=1 // loop_header_branch
      %14 = sbr.rel (%p12) target = $region8
    $region5: #{msi_embedder1_forward.1} parent=1 // loop_body
      %s16 = ssub.s32 %s11, 1
      %s17 = ssub.s32 %s11, 2
      %s24 = sadd.s32 1, %s19
      %p25 = scmp.ge.s32.totalorder %s24, 1
      %s26 = scalar_select %p25, 0, %s24
      %s27 = sadd.s32 1, %s18
      %s28 = scalar_select %p25, %s27, %s18
      %p29 = scmp.ge.s32.totalorder %s28, 2
      %s30 = scalar_select %p29, 0, %s28
      %s32 = sadd.s32 %s31, 1
      %p35 = scmp.eq.s32.totalorder %s11, 1
      %p36 = scmp.ne.s32.totalorder %s31, %s33
      %p37 = scmp.eq.s32.totalorder %s11, 0
      %p38 = por %p36, %p37
      %p39 = scmp.ne.s32.totalorder %s31, %s33
      %p40 = scmp.eq.s32.totalorder %s16, 1
      %p41 = por %p39, %p40
      %p42 = scmp.ne.s32.totalorder %s33, %s34
      %p43 = scmp.eq.s32.totalorder %s16, 0
      %p44 = por %p42, %p43
      %p45 = scmp.ne.s32.totalorder %s33, %s34
      %p46 = scmp.eq.s32.totalorder %s17, 1
      %p47 = por %p45, %p46
      %p49 = scmp.ne.s32.totalorder %s34, %s48
      %p50 = scmp.eq.s32.totalorder %s17, 0
      %p51 = por %p49, %p50
      %s53 = sadd.s32 %s52, 1
      %p56 = scmp.eq.s32.totalorder %s11, 1
      %p57 = scmp.ne.s32.totalorder %s52, %s54
      %p58 = scmp.eq.s32.totalorder %s11, 0
      %p59 = por %p57, %p58
      %p60 = scmp.ne.s32.totalorder %s52, %s54
      %p61 = scmp.eq.s32.totalorder %s16, 1
      %p62 = por %p60, %p61
      %p63 = scmp.ne.s32.totalorder %s54, %s55
      %p64 = scmp.eq.s32.totalorder %s16, 0
      %p65 = por %p63, %p64
      %p66 = scmp.ne.s32.totalorder %s54, %s55
      %p67 = scmp.eq.s32.totalorder %s17, 1
      %p68 = por %p66, %p67
      %p70 = scmp.ne.s32.totalorder %s55, %s69
      %p71 = scmp.eq.s32.totalorder %s17, 0
      %p72 = por %p70, %p71
      %s73 = ssub.s32 %s18, %s30
      %s74 = ssub.s32 %s19, %s26
      %s75 = sor.u32 %s73, %s74
      %p76 = scmp.eq.s32.totalorder %s75, 0
      %s78 = sadd.s32 %s77, 1
      %s79 = scalar_select %p76, %s77, %s78
      %p82 = pneg %p76
      %p83 = scmp.eq.s32.totalorder %s11, 1
      %p84 = por %p82, %p83
      %p85 = scmp.ne.s32.totalorder %s77, %s80
      %p86 = scmp.eq.s32.totalorder %s11, 0
      %p87 = por %p85, %p86
      %p88 = scmp.ne.s32.totalorder %s77, %s80
      %p89 = scmp.eq.s32.totalorder %s16, 1
      %p90 = por %p88, %p89
      %p91 = scmp.ne.s32.totalorder %s80, %s81
      %p92 = scmp.eq.s32.totalorder %s16, 0
      %p93 = por %p91, %p92
      %p94 = scmp.ne.s32.totalorder %s80, %s81
      %p95 = scmp.eq.s32.totalorder %s17, 1
      %p96 = por %p94, %p95
      %p98 = scmp.ne.s32.totalorder %s81, %s97
      %p99 = scmp.eq.s32.totalorder %s17, 0
      %p100 = por %p98, %p99
      %s101 = ssub.s32 %s18, %s30
      %s102 = ssub.s32 %s19, %s26
      %s103 = sor.u32 %s101, %s102
      %p104 = scmp.eq.s32.totalorder %s103, 0
      %s106 = sadd.s32 %s105, 1
      %s107 = scalar_select %p104, %s105, %s106
      %p110 = pneg %p104
      %p111 = scmp.eq.s32.totalorder %s11, 1
      %p112 = por %p110, %p111
      %p113 = scmp.ne.s32.totalorder %s105, %s108
      %p114 = scmp.eq.s32.totalorder %s11, 0
      %p115 = por %p113, %p114
      %p116 = scmp.ne.s32.totalorder %s105, %s108
      %p117 = scmp.eq.s32.totalorder %s16, 1
      %p118 = por %p116, %p117
      %p119 = scmp.ne.s32.totalorder %s108, %s109
      %p120 = scmp.eq.s32.totalorder %s16, 0
      %p121 = por %p119, %p120
      %p122 = scmp.ne.s32.totalorder %s108, %s109
      %p123 = scmp.eq.s32.totalorder %s17, 1
      %p124 = por %p122, %p123
      %p126 = scmp.ne.s32.totalorder %s109, %s125
      %p127 = scmp.eq.s32.totalorder %s17, 0
      %p128 = por %p126, %p127
      %p129 = scmp.le.s32.totalorder 1, %s11
      %p130 = scmp.lt.s32.totalorder %s11, 3
      %p131 = pnand %p129, %p130
      %p132 = pneg %p131
      // Predicated region
      $region9: #{msi_embedder1_forward.1} parent=5 // pred_check
        _
      $region10: #{msi_embedder1_forward.1} parent=5 // pred_check_branch
        %134 = sbr.rel (%p131) target = $region12
      $region11: #{msi_embedder1_forward.1} parent=5 // pred_region
        %s135 = ssub.s32 %s11, 1
        // Predicated region
        $region13: #{msi_embedder1_forward.1} parent=11 // pred_check
          %p136 = pneg %p44
        $region14: #{msi_embedder1_forward.1} parent=11 // pred_check_branch
          %138 = sbr.rel (%p136) target = $region16
        $region15: #{msi_embedder1_forward.1} parent=11 // pred_region
          %140 = vsyncadd [#allocation3], 0
          %s142 = sshll.u32 %s0, 4
          %s143 = int_to_ptr.vmem [resolvable:$true] %s142
          %145 = dma.vmem_to_smem %s143, 64, [#allocation2], [#allocation3]
        $region16: #{msi_embedder1_forward.1} parent=11 // pred_fallthru
          _
        // Predicated region
        $region17: #{msi_embedder1_forward.1} parent=11 // pred_check
          %p146 = pneg %p65
        $region18: #{msi_embedder1_forward.1} parent=11 // pred_check_branch
          %148 = sbr.rel (%p146) target = $region20
        $region19: #{msi_embedder1_forward.1} parent=11 // pred_region
          %150 = vsyncadd [#allocation5], 0
          %s152 = sshll.u32 %s1, 4
          %s153 = int_to_ptr.vmem [resolvable:$true] %s152
          %155 = dma.vmem_to_smem %s153, 16, [#allocation4], [#allocation5]
        $region20: #{msi_embedder1_forward.1} parent=11 // pred_fallthru
          _
      $region12: #{msi_embedder1_forward.1} parent=5 // pred_fallthru
        _
      %p156 = scmp.lt.s32.totalorder %s11, 2
      // Predicated region
      $region21: #{msi_embedder1_forward.1} parent=5 // pred_check
        %p157 = pneg %p156
      $region22: #{msi_embedder1_forward.1} parent=5 // pred_check_branch
        %159 = sbr.rel (%p157) target = $region24
      $region23: #{msi_embedder1_forward.1} parent=5 // pred_region
        // Predicated region
        $region25: #{msi_embedder1_forward.1} parent=23 // pred_check
          %p160 = pneg %p87
        $region26: #{msi_embedder1_forward.1} parent=23 // pred_check_branch
          %162 = sbr.rel (%p160) target = $region28
        $region27: #{msi_embedder1_forward.1} parent=23 // pred_region
          %p163 = scmp.lt.s32.totalorder %s18, 1
          %s164 = scalar_select %p163, %s18, 1
          %p165 = scmp.lt.s32.totalorder %s19, 0
          %s166 = scalar_select %p165, %s19, 0
          %s167 = smul.addr %s164, 4
          %s168 = sadd.s32 %s166, %s167
          %s169 = smul.addr %s168, 2
          %s170 = scalar_lea.vmem %s2, %s169
        $region28: #{msi_embedder1_forward.1} parent=23 // pred_fallthru
          _
      $region24: #{msi_embedder1_forward.1} parent=5 // pred_fallthru
        _
      %p171 = scmp.le.s32.totalorder 1, %s11
      %p172 = scmp.lt.s32.totalorder %s11, 3
      %p173 = pnand %p171, %p172
      %p174 = pneg %p173
      // Predicated region
      $region29: #{msi_embedder1_forward.1} parent=5 // pred_check
        _
      $region30: #{msi_embedder1_forward.1} parent=5 // pred_check_branch
        %176 = sbr.rel (%p173) target = $region32
      $region31: #{msi_embedder1_forward.1} parent=5 // pred_region
        %s177 = ssub.s32 %s11, 1
        // Predicated region
        $region33: #{msi_embedder1_forward.1} parent=31 // pred_check
          %p178 = pneg %p44
        $region34: #{msi_embedder1_forward.1} parent=31 // pred_check_branch
          %180 = sbr.rel (%p178) target = $region36
        $region35: #{msi_embedder1_forward.1} parent=31 // pred_region
          %182 = dma.done [#allocation3], 64
        $region36: #{msi_embedder1_forward.1} parent=31 // pred_fallthru
          _
        // Predicated region
        $region37: #{msi_embedder1_forward.1} parent=31 // pred_check
          %p183 = pneg %p65
        $region38: #{msi_embedder1_forward.1} parent=31 // pred_check_branch
          %185 = sbr.rel (%p183) target = $region40
        $region39: #{msi_embedder1_forward.1} parent=31 // pred_region
          %187 = dma.done [#allocation5], 16
        $region40: #{msi_embedder1_forward.1} parent=31 // pred_fallthru
          _
        %188 = sfence
        %p189 = pneg %p44
        %p190 = pneg %p41
        %p191 = pneg %p65
        %p192 = pneg %p62
        %p193 = scmp.lt.s32.totalorder %s20, 1
        %s194 = scalar_select %p193, %s20, 1
        %p195 = scmp.lt.s32.totalorder %s21, 0
        %s196 = scalar_select %p195, %s21, 0
        %s197 = smul.addr %s194, 4
        %s198 = sadd.s32 %s196, %s197
        %s199 = smul.addr %s198, 2
        %s200 = scalar_lea.vmem %s2, %s199
        %p201 = pneg %p93
        %p202 = pneg %p90
        %p203 = pneg %p121
        %p204 = pneg %p118
        %p205 = scmp.lt.s32.totalorder %s20, 1
        %s206 = scalar_select %p205, %s20, 1
        %p207 = scmp.lt.s32.totalorder %s21, 0
        %s208 = scalar_select %p207, %s21, 0
        %s209 = smul.addr %s206, 3
        %s210 = sadd.s32 %s208, %s209
        %s211 = smul.addr %s210, 2
        %s212 = scalar_lea.vmem %s3, %s211
        %p213 = scmp.lt.s32.totalorder %s20, 1
        %s214 = scalar_select %p213, %s20, 1
        %p215 = scmp.lt.s32.totalorder %s21, 0
        %s216 = scalar_select %p215, %s21, 0
        %s217 = smul.addr %s214, 4
        %s218 = sadd.s32 %s216, %s217
        %s219 = smul.addr %s218, 2
        %s220 = scalar_lea.vmem %s2, %s219
        %p221 = scmp.lt.s32.totalorder %s20, 1
        %s222 = scalar_select %p221, %s20, 1
        %p223 = scmp.lt.s32.totalorder %s21, 0
        %s224 = scalar_select %p223, %s21, 0
        %s225 = smul.addr %s222, 3
        %s226 = sadd.s32 %s224, %s225
        %s227 = smul.addr %s226, 2
        %s228 = scalar_lea.vmem %s3, %s227
        %s229 = sld [smem:[#allocation2]]
        %v230 = vld [vmem:[%s220] sm:$0x3]
        %v231 = vstv %s229
        %v232 = vmul.f32 %v231, %v230
        %s233 = sld [smem:[#allocation2 + $0x1]]
        %s234 = scalar_lea.vmem %s220, 2
        %v235 = vld [vmem:[%s234] sm:$0x3]
        %v236 = vstv %s233
        %v237 = vmul.f32 %v236, %v235
        %v238 = vadd.f32 %v232, %v237
        %s239 = sld [smem:[#allocation2 + $0x2]]
        %s240 = scalar_lea.vmem %s220, 4
        %v241 = vld [vmem:[%s240] sm:$0x3]
        %v242 = vstv %s239
        %v243 = vmul.f32 %v242, %v241
        %v244 = vadd.f32 %v238, %v243
        %s245 = sld [smem:[#allocation2 + $0x3]]
        %s246 = scalar_lea.vmem %s220, 6
        %v247 = vld [vmem:[%s246] sm:$0x3]
        %v248 = vstv %s245
        %v249 = vmul.f32 %v248, %v247
        %v250 = vadd.f32 %v244, %v249
        %s251 = sld [smem:[#allocation4]]
        %v252 = vstv %s251
        %v253 = vadd.f32 %v250, %v252
        %254 = vst [vmem:[%s228] sm:$0x3] %v253
        %s255 = sld [smem:[#allocation2 + $0x80]]
        %v256 = vld [vmem:[%s220] sm:$0x3]
        %v257 = vstv %s255
        %v258 = vmul.f32 %v257, %v256
        %s259 = sld [smem:[#allocation2 + $0x81]]
        %v260 = vld [vmem:[%s234] sm:$0x3]
        %v261 = vstv %s259
        %v262 = vmul.f32 %v261, %v260
        %v263 = vadd.f32 %v258, %v262
        %s264 = sld [smem:[#allocation2 + $0x82]]
        %v265 = vld [vmem:[%s240] sm:$0x3]
        %v266 = vstv %s264
        %v267 = vmul.f32 %v266, %v265
        %v268 = vadd.f32 %v263, %v267
        %s269 = sld [smem:[#allocation2 + $0x83]]
        %v270 = vld [vmem:[%s246] sm:$0x3]
        %v271 = vstv %s269
        %v272 = vmul.f32 %v271, %v270
        %v273 = vadd.f32 %v268, %v272
        %s274 = sld [smem:[#allocation4 + $0x1]]
        %v275 = vstv %s274
        %v276 = vadd.f32 %v273, %v275
        %s277 = scalar_lea.vmem %s228, 2
        %278 = vst [vmem:[%s277] sm:$0x3] %v276
        %s279 = sld [smem:[#allocation2 + $0x100]]
        %v280 = vld [vmem:[%s220] sm:$0x3]
        %v281 = vstv %s279
        %v282 = vmul.f32 %v281, %v280
        %s283 = sld [smem:[#allocation2 + $0x101]]
        %v284 = vld [vmem:[%s234] sm:$0x3]
        %v285 = vstv %s283
        %v286 = vmul.f32 %v285, %v284
        %v287 = vadd.f32 %v282, %v286
        %s288 = sld [smem:[#allocation2 + $0x102]]
        %v289 = vld [vmem:[%s240] sm:$0x3]
        %v290 = vstv %s288
        %v291 = vmul.f32 %v290, %v289
        %v292 = vadd.f32 %v287, %v291
        %s293 = sld [smem:[#allocation2 + $0x103]]
        %v294 = vld [vmem:[%s246] sm:$0x3]
        %v295 = vstv %s293
        %v296 = vmul.f32 %v295, %v294
        %v297 = vadd.f32 %v292, %v296
        %s298 = sld [smem:[#allocation4 + $0x2]]
        %v299 = vstv %s298
        %v300 = vadd.f32 %v297, %v299
        %s301 = scalar_lea.vmem %s228, 4
        %302 = vst [vmem:[%s301] sm:$0x3] %v300
        %p303 = scmp.lt.s32.totalorder %s20, 1
        %s304 = scalar_select %p303, %s20, 1
        %p305 = scmp.lt.s32.totalorder %s21, 0
        %s306 = scalar_select %p305, %s21, 0
        %s307 = smul.addr %s304, 3
        %s308 = sadd.s32 %s306, %s307
        %s309 = smul.addr %s308, 2
        %s310 = scalar_lea.vmem %s3, %s309
        // Predicated region
        $region41: #{msi_embedder1_forward.1} parent=31 // pred_check
          %p311 = pneg %p118
        $region42: #{msi_embedder1_forward.1} parent=31 // pred_check_branch
          %313 = sbr.rel (%p311) target = $region44
        $region43: #{msi_embedder1_forward.1} parent=31 // pred_region
          _
        $region44: #{msi_embedder1_forward.1} parent=31 // pred_fallthru
          _
      $region32: #{msi_embedder1_forward.1} parent=5 // pred_fallthru
        _
      %p314 = scmp.le.s32.totalorder 2, %s11
      // Predicated region
      $region45: #{msi_embedder1_forward.1} parent=5 // pred_check
        %p315 = pneg %p314
      $region46: #{msi_embedder1_forward.1} parent=5 // pred_check_branch
        %317 = sbr.rel (%p315) target = $region48
      $region47: #{msi_embedder1_forward.1} parent=5 // pred_region
        %s318 = ssub.s32 %s11, 2
        // Predicated region
        $region49: #{msi_embedder1_forward.1} parent=47 // pred_check
          %p319 = pneg %p124
        $region50: #{msi_embedder1_forward.1} parent=47 // pred_check_branch
          %321 = sbr.rel (%p319) target = $region52
        $region51: #{msi_embedder1_forward.1} parent=47 // pred_region
          %p322 = scmp.lt.s32.totalorder %s22, 1
          %s323 = scalar_select %p322, %s22, 1
          %p324 = scmp.lt.s32.totalorder %s23, 0
          %s325 = scalar_select %p324, %s23, 0
          %s326 = smul.addr %s323, 3
          %s327 = sadd.s32 %s325, %s326
          %s328 = smul.addr %s327, 2
          %s329 = scalar_lea.vmem %s3, %s328
        $region52: #{msi_embedder1_forward.1} parent=47 // pred_fallthru
          _
      $region48: #{msi_embedder1_forward.1} parent=5 // pred_fallthru
        _
    $region6: #{msi_embedder1_forward.1} parent=1 // loop_footer
      %s15 = sadd.s32 1, %s11
    $region7: #{msi_embedder1_forward.1} parent=1 // loop_footer_branch
      %10 = sbr.rel target = $region3
    $region8: #{msi_embedder1_forward.1} parent=1 // loop_exit
      _
    %330 = vsyncpa [#allocation3], 1
    %s331 = scalar_lea.sflag [#allocation3], 1
    %332 = vsyncpa %s331, 1
    %333 = vsyncpa [#allocation5], 1

</llo_original>
